<compile_context>
chip_gen: v6e
topology: v6e:2x2x1
jax: 0.10.0
libtpu: 0.0.40
codegen_flags: <defaults>
</compile_context>

<pallas_src>
import functools

import jax
import jax.numpy as jnp
from jax.experimental import pallas as pl
from jax.experimental.pallas import tpu as pltpu


def _round_up(x, m):
    return (x + m - 1) // m * m


def rotate_kernel(mention_ref, head_ref, tail_ref, out_ref, *, scaling):
    # Per-grid-step views:
    #   mention_ref: (TB, D)   head_ref/tail_ref: (TB, TN, D)   out_ref: (TB, TN)
    m = mention_ref[...].astype(jnp.float32)          # (TB, D)
    h = head_ref[...].astype(jnp.float32)             # (TB, TN, D)
    t = tail_ref[...].astype(jnp.float32)             # (TB, TN, D)
    diff = m[:, None, :] * h - t                      # broadcast mention over TN
    sq = jnp.sum(diff * diff, axis=-1)                # (TB, TN), f32 accumulation
    out_ref[...] = (scaling * sq).astype(out_ref.dtype)


def _choose_tiles(B, N, D, itemsize):
    """Pick (TB, TN, Bp, Np): ~1-2 MiB head/tail blocks, lane-dense TN when N >= 128."""
    target = 2 << 20  # ~2 MiB per head/tail block per pipeline buffer

    if N < 128:
        # Tiny candidate count: padding N to 128 would multiply HBM traffic.
        # Take the whole candidate dim and block the batch dim instead.
        TN, Np = N, N
    else:
        # Lane-dense output: TN multiple of 128. Grow TN only when N is large
        # enough that padding waste stays small and 8 batch rows still fit the
        # block budget.
        if N >= 2048 and 8 * 512 * D * itemsize <= target:
            TN = 512
        elif N >= 1024 and 8 * 256 * D * itemsize <= target:
            TN = 256
        else:
            TN = 128
        Np = _round_up(N, TN)

    row_bytes = max(1, TN * D * itemsize)
    tb_cap = max(1, target // row_bytes)
    if B <= 8 or B <= tb_cap:
        # Whole batch per step (block dim == full array dim, so the (8,128)
        # tiling rule is satisfied for any B).
        TB, Bp = B, B
    else:
        TB = max(8, (tb_cap // 8) * 8)   # multiple of 8 for the sublane rule
        Bp = _round_up(B, TB)
    return TB, TN, Bp, Np


def rotate(mention, head, tail):
    """mention: (B, D), head: (B, N, D), tail: (B, N, D) -> (B, N)."""
    B, D = mention.shape
    Bh, N, Dh = head.shape
    assert (Bh, Dh) == (B, D) and tail.shape == (B, N, D)
    scaling = float(D) ** (-0.5)  # args.entity_dim ** -0.5

    itemsize = jnp.dtype(mention.dtype).itemsize
    TB, TN, Bp, Np = _choose_tiles(B, N, D, itemsize)

    # Zero-pad batch / candidate dims up to the tile grid; padded rows produce
    # zeros and are sliced away below.
    if Bp != B or Np != N:
        mention = jnp.pad(mention, ((0, Bp - B), (0, 0)))
        head = jnp.pad(head, ((0, Bp - B), (0, Np - N), (0, 0)))
        tail = jnp.pad(tail, ((0, Bp - B), (0, Np - N), (0, 0)))

    grid = (Bp // TB, Np // TN)
    kernel = functools.partial(rotate_kernel, scaling=scaling)

    # Advisory cost for XLA's scheduler (logical, unpadded sizes).
    flops = 4 * B * N * D                                  # mul, sub, square, add
    bytes_accessed = (2 * B * N * D + B * D + B * N) * itemsize

    out = pl.pallas_call(
        kernel,
        out_shape=jax.ShapeDtypeStruct((Bp, Np), mention.dtype),
        grid_spec=pltpu.PrefetchScalarGridSpec(
            num_scalar_prefetch=0,
            grid=grid,
            in_specs=[
                pl.BlockSpec((TB, D), lambda b, n: (b, 0)),
                pl.BlockSpec((TB, TN, D), lambda b, n: (b, n, 0)),
                pl.BlockSpec((TB, TN, D), lambda b, n: (b, n, 0)),
            ],
            out_specs=pl.BlockSpec((TB, TN), lambda b, n: (b, n)),
        ),
        compiler_params=pltpu.CompilerParams(
            dimension_semantics=("parallel", "parallel"),
            vmem_limit_bytes=64 * 1024 * 1024,
        ),
        cost_estimate=pl.CostEstimate(
            flops=flops, transcendentals=0, bytes_accessed=bytes_accessed
        ),
    )(mention, head, tail)

    return out[:B, :N]


if __name__ == "__main__":
    def reference(mention, head, tail):
        d = mention.shape[-1]
        return (float(d) ** -0.5) * jnp.sum(
            (mention[:, None, :] * head - tail) ** 2, axis=-1
        )

    key = jax.random.PRNGKey(0)

    # Case 1: tiny toy shapes (small-N path, no padding, full-batch block).
    B, N, D = 4, 8, 32
    k1, k2, k3, key = jax.random.split(key, 4)
    mention = jax.random.normal(k1, (B, D), dtype=jnp.float32)
    head = jax.random.normal(k2, (B, N, D), dtype=jnp.float32)
    tail = jax.random.normal(k3, (B, N, D), dtype=jnp.float32)
    out = rotate(mention, head, tail)
    jax.block_until_ready(out)
    assert out.shape == (B, N)
    assert jnp.allclose(out, reference(mention, head, tail), atol=1e-5, rtol=1e-5), \
        "mismatch vs reference (case 1)"

    # Case 2: exercises lane-dense candidate tiling (TN=128) + N padding/slicing.
    B, N, D = 12, 300, 64
    k1, k2, k3, key = jax.random.split(key, 4)
    mention = jax.random.normal(k1, (B, D), dtype=jnp.float32)
    head = jax.random.normal(k2, (B, N, D), dtype=jnp.float32)
    tail = jax.random.normal(k3, (B, N, D), dtype=jnp.float32)
    out = rotate(mention, head, tail)
    jax.block_until_ready(out)
    assert out.shape == (B, N)
    assert jnp.allclose(out, reference(mention, head, tail), atol=1e-4, rtol=1e-4), \
        "mismatch vs reference (case 2)"

    print("KERNEL_OK")
</pallas_src>

<mosaic_0001>
module attributes {stable_mosaic.version = 11 : i64} {
  func.func @rotate_kernel(%arg0: i32, %arg1: i32, %arg2: memref<4x32xf32, #tpu.memory_space<vmem>>, %arg3: memref<4x8x32xf32, #tpu.memory_space<vmem>>, %arg4: memref<4x8x32xf32, #tpu.memory_space<vmem>>, %arg5: memref<4x8xf32, #tpu.memory_space<vmem>>) attributes {dimension_semantics = [#tpu.dimension_semantics<parallel>, #tpu.dimension_semantics<parallel>], iteration_bounds = array<i64: 1, 1>, scalar_prefetch = 0 : i64, scratch_operands = 0 : i64, tpu.core_type = #tpu.core_type<tc>, window_params = [{transform_indices = @transform_0, window_bounds = array<i64: 4, 32>}, {transform_indices = @transform_1, window_bounds = array<i64: 4, 8, 32>}, {transform_indices = @transform_2, window_bounds = array<i64: 4, 8, 32>}, {transform_indices = @transform_3, window_bounds = array<i64: 4, 8>}]} {
    %c0 = arith.constant 0 : index
    %c0_0 = arith.constant 0 : index
    %0 = vector.load %arg2[%c0, %c0_0] : memref<4x32xf32, #tpu.memory_space<vmem>>, vector<4x32xf32>
    %c0_1 = arith.constant 0 : index
    %c0_2 = arith.constant 0 : index
    %c0_3 = arith.constant 0 : index
    %1 = vector.load %arg3[%c0_1, %c0_2, %c0_3] : memref<4x8x32xf32, #tpu.memory_space<vmem>>, vector<4x8x32xf32>
    %c0_4 = arith.constant 0 : index
    %c0_5 = arith.constant 0 : index
    %c0_6 = arith.constant 0 : index
    %2 = vector.load %arg4[%c0_4, %c0_5, %c0_6] : memref<4x8x32xf32, #tpu.memory_space<vmem>>, vector<4x8x32xf32>
    %3 = vector.shape_cast %0 : vector<4x32xf32> to vector<4x1x32xf32>
    %4 = vector.broadcast %3 : vector<4x1x32xf32> to vector<4x8x32xf32>
    %5 = arith.mulf %4, %1 : vector<4x8x32xf32>
    %6 = arith.subf %5, %2 : vector<4x8x32xf32>
    %7 = arith.mulf %6, %6 : vector<4x8x32xf32>
    %cst = arith.constant dense<0.000000e+00> : vector<4x8xf32>
    %8 = vector.multi_reduction <add>, %7, %cst [2] : vector<4x8x32xf32> to vector<4x8xf32>
    %cst_7 = arith.constant 0.176776692 : f32
    %9 = vector.broadcast %cst_7 : f32 to vector<4x8xf32>
    %10 = arith.mulf %9, %8 : vector<4x8xf32>
    %c0_8 = arith.constant 0 : index
    %c0_9 = arith.constant 0 : index
    %11 = vector.load %arg5[%c0_8, %c0_9] : memref<4x8xf32, #tpu.memory_space<vmem>>, vector<4x8xf32>
    tpu.vector_store %arg5[%c0_8, %c0_9], %10 {strides = array<i32>} : memref<4x8xf32, #tpu.memory_space<vmem>>, vector<4x8xf32>,
    return
  }
  func.func @transform_0(%arg0: i32, %arg1: i32) -> (i32, i32) {
    %c0_i32 = arith.constant 0 : i32
    %c0_i32_0 = arith.constant 0 : i32
    return %arg0, %c0_i32 : i32, i32
  }
  func.func @transform_1(%arg0: i32, %arg1: i32) -> (i32, i32, i32) {
    %c0_i32 = arith.constant 0 : i32
    %c0_i32_0 = arith.constant 0 : i32
    return %arg0, %arg1, %c0_i32 : i32, i32, i32
  }
  func.func @transform_2(%arg0: i32, %arg1: i32) -> (i32, i32, i32) {
    %c0_i32 = arith.constant 0 : i32
    %c0_i32_0 = arith.constant 0 : i32
    return %arg0, %arg1, %c0_i32 : i32, i32, i32
  }
  func.func @transform_3(%arg0: i32, %arg1: i32) -> (i32, i32) {
    %c0_i32 = arith.constant 0 : i32
    return %arg0, %arg1 : i32, i32
  }
}

</mosaic_0001>

<llo_original>
// kernel: tpu_custom_call.1
$region0: #{tpu_custom_call.1}
  #allocation0 [shape = 'u32[]', space=smem, size = 0x4, offset = 0x4, fixed_abs, tag = 'smem constant byte address 0x4 - core index']
  #allocation1 [shape = 'u32[144,128]{1,0:T(1,128)}', space=vmem, size = 0x12000, scoped, tag = 'internal scratch']
  %s0 = inlined_call_operand.hbm [shape: f32[4,32], index: 0, kind: input, shape index: {}]
  %s1 = inlined_call_operand.hbm [shape: f32[4,8,32], index: 1, kind: input, shape index: {}]
  %s2 = inlined_call_operand.hbm [shape: f32[4,8,32], index: 2, kind: input, shape index: {}]
  %s3 = inlined_call_operand.hbm [shape: f32[4,8], index: 3, kind: output, shape index: {}]
  %s4 = sld [smem:[#allocation0]]
  $region34: #{tpu_custom_call.1} parent=0
    _
  %s6 = ssub.s32 1, %s4
  %s7 = scalar_select 0, %s6, %s4
  $region1: #{tpu_custom_call.1} parent=0
    #allocation2 [shape = 'u8[2048]{0}', space=vmem, size = 0x800, scoped, tag = 'input window, operand 0, single buffered']
    #allocation3 [shape = 's32[1]{0}', space=sflag, size = 0x4, scoped, tag = 'scoped memory for tpu_custom_call.1']
    #allocation4 [shape = 's32[1]{0}', space=sflag, size = 0x4, scoped, tag = 'scoped memory for tpu_custom_call.1']
    #allocation5 [shape = 'u8[16384]{0}', space=vmem, size = 0x4000, scoped, tag = 'input window, operand 1, single buffered']
    #allocation6 [shape = 's32[1]{0}', space=sflag, size = 0x4, scoped, tag = 'scoped memory for tpu_custom_call.1']
    #allocation7 [shape = 'u8[16384]{0}', space=vmem, size = 0x4000, scoped, tag = 'input window, operand 2, single buffered']
    #allocation8 [shape = 'u8[2048]{0}', space=vmem, size = 0x800, scoped, tag = 'output window, operand 0, single buffered']
    %8 = vsyncpa [#allocation3], 0
    %9 = vsyncpa [#allocation6], 0
    %10 = vsyncpa [#allocation4], 0
    // Predicated region
    $region2: #{tpu_custom_call.1} parent=1 // pred_check
      _
    $region3: #{tpu_custom_call.1} parent=1 // pred_check_branch
      %12 = sbr.rel (0) target = $region5
    $region4: #{tpu_custom_call.1} parent=1 // pred_region
      %s14 = ssub.s32 64, 64
      %15 = vsyncadd [#allocation3], %s14
      %s17 = sshll.u32 [#allocation2], 4
      %s18 = int_to_ptr.vmem [resolvable:$true] %s17
      %20 = dma.hbm_to_vmem [thread:$0]  %s0, 64, %s18, [#allocation3]
    $region5: #{tpu_custom_call.1} parent=1 // pred_fallthru
      _
    // Predicated region
    $region6: #{tpu_custom_call.1} parent=1 // pred_check
      _
    $region7: #{tpu_custom_call.1} parent=1 // pred_check_branch
      %22 = sbr.rel (0) target = $region9
    $region8: #{tpu_custom_call.1} parent=1 // pred_region
      %s24 = ssub.s32 512, 512
      %25 = vsyncadd [#allocation6], %s24
      %s26 = sshll.u32 [#allocation5], 4
      %s27 = int_to_ptr.vmem [resolvable:$true] %s26
      %32 = dma.hbm_to_vmem [thread:$0]  %s1, 512, %s27, [#allocation6], 128, 128, 8
    $region9: #{tpu_custom_call.1} parent=1 // pred_fallthru
      _
    // Predicated region
    $region10: #{tpu_custom_call.1} parent=1 // pred_check
      _
    $region11: #{tpu_custom_call.1} parent=1 // pred_check_branch
      %34 = sbr.rel (0) target = $region13
    $region12: #{tpu_custom_call.1} parent=1 // pred_region
      %s36 = ssub.s32 512, 512
      %37 = vsyncadd [#allocation6], %s36
      %s38 = sshll.u32 [#allocation7], 4
      %s39 = int_to_ptr.vmem [resolvable:$true] %s38
      %44 = dma.hbm_to_vmem [thread:$0]  %s2, 512, %s39, [#allocation6], 128, 128, 8
    $region13: #{tpu_custom_call.1} parent=1 // pred_fallthru
      _
    // Predicated region
    $region14: #{tpu_custom_call.1} parent=1 // pred_check
      _
    $region15: #{tpu_custom_call.1} parent=1 // pred_check_branch
      %46 = sbr.rel (0) target = $region17
    $region16: #{tpu_custom_call.1} parent=1 // pred_region
      %47 = dma.done [#allocation3], 64
    $region17: #{tpu_custom_call.1} parent=1 // pred_fallthru
      _
    // Predicated region
    $region18: #{tpu_custom_call.1} parent=1 // pred_check
      _
    $region19: #{tpu_custom_call.1} parent=1 // pred_check_branch
      %49 = sbr.rel (0) target = $region21
    $region20: #{tpu_custom_call.1} parent=1 // pred_region
      %50 = dma.done [#allocation6], 512
    $region21: #{tpu_custom_call.1} parent=1 // pred_fallthru
      _
    // Predicated region
    $region22: #{tpu_custom_call.1} parent=1 // pred_check
      _
    $region23: #{tpu_custom_call.1} parent=1 // pred_check_branch
      %52 = sbr.rel (0) target = $region25
    $region24: #{tpu_custom_call.1} parent=1 // pred_region
      %53 = dma.done [#allocation6], 512
    $region25: #{tpu_custom_call.1} parent=1 // pred_fallthru
      _
    %v54 = vld [vmem:[#allocation2] sm:$0xf]
    %v55 = vld [vmem:[#allocation5] sm:$0xff]
    %v56 = vld [vmem:[#allocation5 + $0x8] sm:$0xff]
    %v57 = vld [vmem:[#allocation5 + $0x10] sm:$0xff]
    %v58 = vld [vmem:[#allocation5 + $0x18] sm:$0xff]
    %v59 = vld [vmem:[#allocation7] sm:$0xff]
    %v60 = vld [vmem:[#allocation7 + $0x8] sm:$0xff]
    %v61 = vld [vmem:[#allocation7 + $0x10] sm:$0xff]
    %v62 = vld [vmem:[#allocation7 + $0x18] sm:$0xff]
    %v65 = vunpack.c.l.s4 1966171168
    %v66 = vunpack.c.0.s8 %v65
    %v67 = vlaneseq
    %v68 = vshrl.u32 %v67, 7
    %v69 = vsub.s32 %v66, %v68
    %v70 = vrot.slane %v54, %v69
    %v71 = vcombine.high %v70, %v70
    %v73 = vunpack.c.l.s4 1966171168
    %v74 = vunpack.c.0.s8 %v73
    %v75 = vlaneseq
    %v76 = vshrl.u32 %v75, 7
    %v77 = vsub.s32 %v74, %v76
    %v78 = vrot.slane %v70, %v77
    %v80 = vunpack.c.l.s4 1966171168
    %v81 = vunpack.c.0.s8 %v80
    %v82 = vlaneseq
    %v83 = vshrl.u32 %v82, 7
    %v84 = vsub.s32 %v81, %v83
    %v85 = vrot.slane %v71, %v84
    %v86 = vcombine.high %v78, %v78
    %v87 = vcombine.high %v85, %v85
    %v88 = vlaneseq
    %v89 = vshrl.u32 %v88, 7
    %v90 = vsub.s32 0, %v89
    %v91 = vrot.slane %v78, %v90
    %v92 = vlaneseq
    %v93 = vshrl.u32 %v92, 7
    %v94 = vsub.s32 0, %v93
    %v95 = vrot.slane %v85, %v94
    %v96 = vlaneseq
    %v97 = vshrl.u32 %v96, 7
    %v98 = vsub.s32 0, %v97
    %v99 = vrot.slane %v86, %v98
    %v100 = vlaneseq
    %v101 = vshrl.u32 %v100, 7
    %v102 = vsub.s32 0, %v101
    %v103 = vrot.slane %v87, %v102
    %v108 = vmul.f32 %v91, %v55
    %v109 = vmul.f32 %v95, %v56
    %v110 = vmul.f32 %v99, %v57
    %v111 = vmul.f32 %v103, %v58
    %v112 = vsub.f32 %v108, %v59
    %v113 = vsub.f32 %v109, %v60
    %v114 = vsub.f32 %v110, %v61
    %v115 = vsub.f32 %v111, %v62
    %v116 = vmul.f32 %v112, %v112
    %v117 = vmul.f32 %v113, %v113
    %v118 = vmul.f32 %v114, %v114
    %v119 = vmul.f32 %v115, %v115
    %vm120 = vcmask 261120
    %v121 = vsel %vm120, %v116, 0.0
    %122 = vadd.xlane.f32.xlu0 %v121
    %v123 = vpop.xlane.xlu0 %122
    %v124 = vsel %vm120, %v117, 0.0
    %125 = vadd.xlane.f32.xlu0 %v124
    %v126 = vpop.xlane.xlu0 %125
    %v127 = vsel %vm120, %v118, 0.0
    %128 = vadd.xlane.f32.xlu0 %v127
    %v129 = vpop.xlane.xlu0 %128
    %v130 = vsel %vm120, %v119, 0.0
    %131 = vadd.xlane.f32.xlu0 %v130
    %v132 = vpop.xlane.xlu0 %131
    %v133 = vmul.f32 %v123, 0.17677669
    %v134 = vmul.f32 %v126, 0.17677669
    %v135 = vmul.f32 %v129, 0.17677669
    %v136 = vmul.f32 %v132, 0.17677669
    %v141 = vlaneseq
    %v142 = vand.u32 %v141, 127
    %v143 = vlaneseq
    %v144 = vshrl.u32 %v143, 7
    %v145 = vsub.s32 %v142, %v144
    %v146 = vrot.slane %v133, %v145
    %v147 = vlaneseq
    %v148 = vshrl.u32 %v147, 7
    %v149 = vsub.s32 %v142, %v148
    %v150 = vrot.slane %v134, %v149
    %v151 = vlaneseq
    %v152 = vshrl.u32 %v151, 7
    %v153 = vsub.s32 %v142, %v152
    %v154 = vrot.slane %v135, %v153
    %v155 = vlaneseq
    %v156 = vshrl.u32 %v155, 7
    %v157 = vsub.s32 %v142, %v156
    %v158 = vrot.slane %v136, %v157
    %vm159 = vcmask 1041409
    %v160 = vsel %vm159, %v150, %v146
    %vm161 = vcmask 1042434
    %v162 = vsel %vm161, %v154, %v160
    %vm163 = vcmask 1043459
    %v164 = vsel %vm163, %v158, %v162
    %vm166 = vcmask 60416
    %167 = vst.msk [vmem:[#allocation8] sm:$0xf] %vm166, %v164
    // Predicated region
    $region26: #{tpu_custom_call.1} parent=1 // pred_check
      _
    $region27: #{tpu_custom_call.1} parent=1 // pred_check_branch
      %169 = sbr.rel (0) target = $region29
    $region28: #{tpu_custom_call.1} parent=1 // pred_region
      %s171 = ssub.s32 64, 64
      %172 = vsyncadd [#allocation4], %s171
      %s174 = sshll.u32 [#allocation8], 4
      %s175 = int_to_ptr.vmem [resolvable:$true] %s174
      %177 = dma.vmem_to_hbm [thread:$0]  %s175, 64, %s3, [#allocation4]
    $region29: #{tpu_custom_call.1} parent=1 // pred_fallthru
      _
    // Predicated region
    $region30: #{tpu_custom_call.1} parent=1 // pred_check
      _
    $region31: #{tpu_custom_call.1} parent=1 // pred_check_branch
      %179 = sbr.rel (0) target = $region33
    $region32: #{tpu_custom_call.1} parent=1 // pred_region
      %180 = dma.done [#allocation4], 64
    $region33: #{tpu_custom_call.1} parent=1 // pred_fallthru
      _
    %181 = vsyncpa [#allocation3], 1
    %182 = vsyncpa [#allocation6], 1
    %183 = vsyncpa [#allocation4], 1

</llo_original>
